<compile_context>
chip_gen: v7x
topology: tpu7x:2x2x1
jax: 0.10.0
libtpu: 0.0.40
codegen_flags: <defaults>
</compile_context>

<pallas_src>
import functools

import numpy as np
import jax
import jax.numpy as jnp
from jax.experimental import pallas as pl
from jax.experimental.pallas import tpu as pltpu

IN_CHANNELS = 3
OUT_CHANNELS = 16
KERNEL_SIZE = 3
SUB1 = 0.5
SUB2 = 0.2
POOL = 2
LANE_BLOCK = 2048          # lanes (pooled positions) per grid step; sweep 512..8192


def _round_up(a, b):
    return (a + b - 1) // b * b


def _fused_conv_tanh_pool_kernel(w_ref, pt_ref, out_ref, *, n_phase):
    # w_ref  : (n_phase, Cout, RC*RC*Cin + 1) bf16 per-phase weights, (bias-SUB1) column
    # pt_ref : (RC*RC*Cin + 1, BLK)           bf16 patch rows (+ ones row), lanes = pooled pos
    # out_ref: (Cout, BLK)                    f32 pooled output, lane-dense full-width store
    pt = pt_ref[...]
    acc = jnp.zeros(out_ref.shape, jnp.float32)
    for p in range(n_phase):                                      # 4 pool phases
        conv = jnp.dot(w_ref[p], pt, preferred_element_type=jnp.float32)   # MXU (bf16)
        acc = acc + jnp.tanh(conv)                                          # EUP
    out_ref[...] = acc * (1.0 / n_phase) - SUB2


@jax.jit
def model_forward(x_nchw, weight, bias):
    """Conv2d(valid) -> tanh(. - SUB1) - SUB2 -> 2x2 avg pool.  NCHW in / NCHW out."""
    N, Cin, H, W = x_nchw.shape
    K = KERNEL_SIZE
    Cout = weight.shape[0]
    Hc, Wc = H - K + 1, W - K + 1
    Hp, Wp = Hc // POOL, Wc // POOL
    T = N * Hp * Wp
    RC = K + POOL - 1                 # 4 distinct row/col offsets: x[2i+R], R in [0, RC)
    KKR = RC * RC * Cin + 1           # patch rows incl. ones row for the folded bias
    n_phase = POOL * POOL

    blk = min(LANE_BLOCK, _round_up(T, 128))      # lane tile, multiple of 128
    Tpad = _round_up(T, blk)

    # ---- patch operand (KKR, Tpad) bf16: one row per distinct (R, C, ci) stride-2
    # subsampling of x (16*Cin rows, ~2.25x fewer than a full 4-phase im2col), + ones row.
    rows = []
    for R in range(RC):
        for C in range(RC):
            sl = x_nchw[:, :, R:R + POOL * Hp:POOL, C:C + POOL * Wp:POOL]  # (N,Cin,Hp,Wp)
            rows.append(jnp.transpose(sl, (1, 0, 2, 3)).reshape(Cin, T))
    patches = jnp.concatenate(rows, axis=0)                                # (RC*RC*Cin, T)
    patches = jnp.concatenate([patches, jnp.ones((1, T), patches.dtype)], axis=0)
    patches = jnp.pad(patches, ((0, 0), (0, Tpad - T))).astype(jnp.bfloat16)

    # ---- per-phase weights: W4[dy*POOL+dx][co, (R*RC+C)*Cin+ci] = w[co, ci, R-dy, C-dx]
    # (zero outside the 3x3 window); last column = bias - SUB1 (pairs with the ones row).
    w_t = jnp.transpose(weight, (0, 2, 3, 1))                     # (Cout, K, K, Cin)
    phase_ws = []
    for dy in range(POOL):
        for dx in range(POOL):
            wp = jnp.pad(w_t, ((0, 0), (dy, RC - K - dy), (dx, RC - K - dx), (0, 0)))
            wp = wp.reshape(Cout, RC * RC * Cin)
            wp = jnp.concatenate([wp, (bias - SUB1)[:, None]], axis=1)     # (Cout, KKR)
            phase_ws.append(wp)
    w4 = jnp.stack(phase_ws, axis=0).astype(jnp.bfloat16)         # (n_phase, Cout, KKR)

    kernel = functools.partial(_fused_conv_tanh_pool_kernel, n_phase=n_phase)
    out = pl.pallas_call(
        kernel,
        out_shape=jax.ShapeDtypeStruct((Cout, Tpad), jnp.float32),
        grid_spec=pltpu.PrefetchScalarGridSpec(
            num_scalar_prefetch=0,
            grid=(Tpad // blk,),                                  # lane-tiled grid
            in_specs=[
                pl.BlockSpec((n_phase, Cout, KKR), lambda i: (0, 0, 0)),   # weights resident
                pl.BlockSpec((KKR, blk), lambda i: (0, i)),                # streamed patches
            ],
            out_specs=pl.BlockSpec((Cout, blk), lambda i: (0, i)),
        ),
        compiler_params=pltpu.CompilerParams(
            dimension_semantics=("parallel",),                    # megacore / v7x 2-TC shard
            vmem_limit_bytes=32 * 1024 * 1024,                    # safe on v5e..v7x; tiles are small
        ),
    )(w4, patches)

    out = out[:, :T].reshape(Cout, N, Hp, Wp)
    return jnp.transpose(out, (1, 0, 2, 3))                       # back to NCHW


def reference(x, weight, bias):
    conv = jax.lax.conv_general_dilated(
        x, weight, window_strides=(1, 1), padding="VALID",
        dimension_numbers=("NCHW", "OIHW", "NCHW"))
    conv = conv + bias[None, :, None, None]
    act = jnp.tanh(conv - SUB1) - SUB2
    N, C, Hc, Wc = act.shape
    Hp, Wp = Hc // POOL, Wc // POOL
    act = act[:, :, :Hp * POOL, :Wp * POOL].reshape(N, C, Hp, POOL, Wp, POOL)
    return act.mean(axis=(3, 5))


if __name__ == "__main__":
    key = jax.random.PRNGKey(0)
    kx, kw, kb = jax.random.split(key, 3)

    N, H, W = 2, 16, 16
    x = jax.random.normal(kx, (N, IN_CHANNELS, H, W), dtype=jnp.float32)

    # deterministic Conv2d-style init (uniform in +-1/sqrt(fan_in))
    fan_in = IN_CHANNELS * KERNEL_SIZE * KERNEL_SIZE
    bound = 1.0 / np.sqrt(fan_in)
    weight = jax.random.uniform(
        kw, (OUT_CHANNELS, IN_CHANNELS, KERNEL_SIZE, KERNEL_SIZE),
        minval=-bound, maxval=bound, dtype=jnp.float32)
    bias = jax.random.uniform(
        kb, (OUT_CHANNELS,), minval=-bound, maxval=bound, dtype=jnp.float32)

    out = jax.block_until_ready(model_forward(x, weight, bias))
    ref = jax.block_until_ready(reference(x, weight, bias))

    assert out.shape == (N, OUT_CHANNELS, (H - KERNEL_SIZE + 1) // 2,
                         (W - KERNEL_SIZE + 1) // 2), out.shape
    # bf16 MXU operands with f32 accumulation -> tolerance loosened vs the f32 reference.
    np.testing.assert_allclose(np.asarray(out), np.asarray(ref), rtol=2e-2, atol=5e-2)
    print("KERNEL_OK")
</pallas_src>

<mosaic_0001>
module attributes {stable_mosaic.version = 11 : i64} {
  func.func @_fused_conv_tanh_pool_kernel(%arg0: i32, %arg1: memref<4x16x49xbf16, #tpu.memory_space<vmem>>, %arg2: memref<49x128xbf16, #tpu.memory_space<vmem>>, %arg3: memref<16x128xf32, #tpu.memory_space<vmem>>) attributes {dimension_semantics = [#tpu.dimension_semantics<parallel>], iteration_bounds = array<i64: 1>, scalar_prefetch = 0 : i64, scratch_operands = 0 : i64, tpu.core_type = #tpu.core_type<tc>, window_params = [{pipeline_mode = #tpu.pipeline_mode<synchronous>, transform_indices = @transform_0, window_bounds = array<i64: 4, 16, 49>}, {transform_indices = @transform_1, window_bounds = array<i64: 49, 128>}, {transform_indices = @transform_2, window_bounds = array<i64: 16, 128>}]} {
    %c0 = arith.constant 0 : index
    %c0_0 = arith.constant 0 : index
    %0 = vector.load %arg2[%c0, %c0_0] : memref<49x128xbf16, #tpu.memory_space<vmem>>, vector<49x128xbf16>
    %cst = arith.constant 0.000000e+00 : f32
    %1 = vector.broadcast %cst : f32 to vector<16x128xf32>
    %c0_1 = arith.constant 0 : index
    %c0_2 = arith.constant 0 : index
    %c0_3 = arith.constant 0 : index
    %2 = vector.load %arg1[%c0_1, %c0_2, %c0_3] : memref<4x16x49xbf16, #tpu.memory_space<vmem>>, vector<1x16x49xbf16>
    %3 = vector.shape_cast %2 : vector<1x16x49xbf16> to vector<16x49xbf16>
    %cst_4 = arith.constant dense<0.000000e+00> : vector<16x128xf32>
    %4 = tpu.matmul %3, %0, %cst_4 {dimension_numbers = #tpu.dot_dimension_numbers<[1], [0], [0], [1], [0, 0, 1, 1], [], []>} : vector<16x49xbf16>, vector<49x128xbf16>, vector<16x128xf32> -> vector<16x128xf32>
    %5 = math.tanh %4 : vector<16x128xf32>
    %6 = arith.addf %1, %5 : vector<16x128xf32>
    %c1 = arith.constant 1 : index
    %c0_5 = arith.constant 0 : index
    %c0_6 = arith.constant 0 : index
    %7 = vector.load %arg1[%c1, %c0_5, %c0_6] : memref<4x16x49xbf16, #tpu.memory_space<vmem>>, vector<1x16x49xbf16>
    %8 = vector.shape_cast %7 : vector<1x16x49xbf16> to vector<16x49xbf16>
    %cst_7 = arith.constant dense<0.000000e+00> : vector<16x128xf32>
    %9 = tpu.matmul %8, %0, %cst_7 {dimension_numbers = #tpu.dot_dimension_numbers<[1], [0], [0], [1], [0, 0, 1, 1], [], []>} : vector<16x49xbf16>, vector<49x128xbf16>, vector<16x128xf32> -> vector<16x128xf32>
    %10 = math.tanh %9 : vector<16x128xf32>
    %11 = arith.addf %6, %10 : vector<16x128xf32>
    %c2 = arith.constant 2 : index
    %c0_8 = arith.constant 0 : index
    %c0_9 = arith.constant 0 : index
    %12 = vector.load %arg1[%c2, %c0_8, %c0_9] : memref<4x16x49xbf16, #tpu.memory_space<vmem>>, vector<1x16x49xbf16>
    %13 = vector.shape_cast %12 : vector<1x16x49xbf16> to vector<16x49xbf16>
    %cst_10 = arith.constant dense<0.000000e+00> : vector<16x128xf32>
    %14 = tpu.matmul %13, %0, %cst_10 {dimension_numbers = #tpu.dot_dimension_numbers<[1], [0], [0], [1], [0, 0, 1, 1], [], []>} : vector<16x49xbf16>, vector<49x128xbf16>, vector<16x128xf32> -> vector<16x128xf32>
    %15 = math.tanh %14 : vector<16x128xf32>
    %16 = arith.addf %11, %15 : vector<16x128xf32>
    %c3 = arith.constant 3 : index
    %c0_11 = arith.constant 0 : index
    %c0_12 = arith.constant 0 : index
    %17 = vector.load %arg1[%c3, %c0_11, %c0_12] : memref<4x16x49xbf16, #tpu.memory_space<vmem>>, vector<1x16x49xbf16>
    %18 = vector.shape_cast %17 : vector<1x16x49xbf16> to vector<16x49xbf16>
    %cst_13 = arith.constant dense<0.000000e+00> : vector<16x128xf32>
    %19 = tpu.matmul %18, %0, %cst_13 {dimension_numbers = #tpu.dot_dimension_numbers<[1], [0], [0], [1], [0, 0, 1, 1], [], []>} : vector<16x49xbf16>, vector<49x128xbf16>, vector<16x128xf32> -> vector<16x128xf32>
    %20 = math.tanh %19 : vector<16x128xf32>
    %21 = arith.addf %16, %20 : vector<16x128xf32>
    %cst_14 = arith.constant 2.500000e-01 : f32
    %22 = vector.broadcast %cst_14 : f32 to vector<16x128xf32>
    %23 = arith.mulf %21, %22 : vector<16x128xf32>
    %cst_15 = arith.constant 2.000000e-01 : f32
    %24 = vector.broadcast %cst_15 : f32 to vector<16x128xf32>
    %25 = arith.subf %23, %24 : vector<16x128xf32>
    %c0_16 = arith.constant 0 : index
    %c0_17 = arith.constant 0 : index
    %26 = vector.load %arg3[%c0_16, %c0_17] : memref<16x128xf32, #tpu.memory_space<vmem>>, vector<16x128xf32>
    tpu.vector_store %arg3[%c0_16, %c0_17], %25 {strides = array<i32>} : memref<16x128xf32, #tpu.memory_space<vmem>>, vector<16x128xf32>,
    return
  }
  func.func @transform_0(%arg0: i32) -> (i32, i32, i32) {
    %c0_i32 = arith.constant 0 : i32
    %c0_i32_0 = arith.constant 0 : i32
    %c0_i32_1 = arith.constant 0 : i32
    %c0_i32_2 = arith.constant 0 : i32
    return %c0_i32, %c0_i32_0, %c0_i32_1 : i32, i32, i32
  }
  func.func @transform_1(%arg0: i32) -> (i32, i32) {
    %c0_i32 = arith.constant 0 : i32
    %c0_i32_0 = arith.constant 0 : i32
    return %c0_i32, %arg0 : i32, i32
  }
  func.func @transform_2(%arg0: i32) -> (i32, i32) {
    %c0_i32 = arith.constant 0 : i32
    %c0_i32_0 = arith.constant 0 : i32
    return %c0_i32, %arg0 : i32, i32
  }
}

</mosaic_0001>

<llo_original>
// kernel: model_forward.1
$region0: #{model_forward.1}
  #allocation0 [shape = 'u32[]', space=smem, size = 0x4, offset = 0x4, fixed_abs, tag = 'smem constant byte address 0x4 - core index']
  #allocation1 [shape = 'u32[144,128]{1,0:T(1,128)}', space=vmem, size = 0x12000, scoped, tag = 'internal scratch']
  %s0 = inlined_call_operand.vmem [shape: bf16[4,16,49], index: 0, kind: input, shape index: {}]
  %s1 = inlined_call_operand.vmem [shape: bf16[49,128], index: 1, kind: input, shape index: {}]
  %s2 = inlined_call_operand.vmem [shape: f32[16,128], index: 2, kind: output, shape index: {}]
  %s3 = sld [smem:[#allocation0]]
  $region18: #{model_forward.1} parent=0
    _
  %s5 = ssub.s32 1, %s3
  %s6 = scalar_select 0, %s5, %s3
  // Predicated region
  $region2: #{model_forward.1} parent=0 // pred_check
    _
  $region3: #{model_forward.1} parent=0 // pred_check_branch
    %8 = sbr.rel (0) target = $region5
  $region4: #{model_forward.1} parent=0 // pred_region
    _
  $region5: #{model_forward.1} parent=0 // pred_fallthru
    _
  // Predicated region
  $region6: #{model_forward.1} parent=0 // pred_check
    _
  $region7: #{model_forward.1} parent=0 // pred_check_branch
    %10 = sbr.rel (0) target = $region9
  $region8: #{model_forward.1} parent=0 // pred_region
    _
  $region9: #{model_forward.1} parent=0 // pred_fallthru
    _
  %v12 = vld [vmem:[%s1] sm:$0xf]
  %v13 = vld [vmem:[%s1 + $0x4] sm:$0xf]
  %v14 = vld [vmem:[%s1 + $0x8] sm:$0xf]
  %v15 = vld [vmem:[%s1 + $0xc] sm:$0xf]
  %v16 = vld [vmem:[%s1 + $0x10] sm:$0xf]
  %v17 = vld [vmem:[%s1 + $0x14] sm:$0xf]
  %v18 = vld [vmem:[%s1 + $0x18] sm:$0x1]
  %v19 = vld [vmem:[%s0] sm:$0xf]
  %v20 = vld [vmem:[%s0 + $0x4] sm:$0xf]
  %v23 = vunpack.c.l.b16 %v19
  %v24 = vunpack.c.l.b16 %v20
  %v25 = vpack.c.b16 %v24, %v23
  %v33 = vunpack.c.l.b16 %v12
  %v34 = vunpack.c.l.b16 %v13
  %v35 = vunpack.c.l.b16 %v14
  %v36 = vunpack.c.l.b16 %v15
  %v37 = vunpack.c.l.b16 %v16
  %v38 = vunpack.c.l.b16 %v17
  %v39 = vunpack.c.l.b16 %v18
  %v40 = vpack.c.b16 %v34, %v33
  %v41 = vpack.c.b16 %v36, %v35
  %v42 = vpack.c.b16 %v38, %v37
  %v43 = vpack.c.b16 %v39, %v39
  %vm47 = vcmask 400384
  %v49 = vsel %vm47, %v25, 0
  %vm51 = vcmask 1040384
  %v52 = vsel 0, 4294967295, 65535
  %v53 = vsel %vm51, %v52, 0
  %v55 = vand.u32 %v43, %v53
  %57 = vmatprep.subr.bf16.mxu0 0
  %58 = vmatpush1.bf16.msra.mxu0 %v40
  %59 = vmatprep.subr.bf16.mxu0 0
  %60 = vmatpush1.bf16.msra.mxu0 %v41
  %61 = vmatprep.subr.bf16.mxu0 0
  %62 = vmatpush1.bf16.msra.mxu0 %v42
  %63 = vmatprep.subr.bf16.mxu0 0
  %64 = vmatpush1.bf16.msra.mxu0 %v55
  %65 = vmatprep.subr.bf16.mxu0 0
  %66 = vmatpush1.bf16.msra.mxu0 0
  %67 = vmatprep.subr.bf16.mxu0 0
  %68 = vmatpush1.bf16.msra.mxu0 0
  %69 = vmatprep.subr.bf16.mxu0 0
  %70 = vmatpush1.bf16.msra.mxu0 0
  %71 = vmatprep.subr.bf16.mxu0 0
  %72 = vmatpush1.bf16.msra.mxu0 0
  %73 = vmatprep.subr.bf16.mxu0 0
  %74 = vmatpush1.bf16.msra.mxu0 0
  %75 = vmatprep.subr.bf16.mxu0 0
  %76 = vmatpush1.bf16.msra.mxu0 0
  %77 = vmatprep.subr.bf16.mxu0 0
  %78 = vmatpush1.bf16.msra.mxu0 0
  %79 = vmatprep.subr.bf16.mxu0 0
  %80 = vmatpush1.bf16.msra.mxu0 0
  %81 = vmatprep.subr.bf16.mxu0 0
  %82 = vmatpush1.bf16.msra.mxu0 0
  %83 = vmatprep.subr.bf16.mxu0 0
  %84 = vmatpush1.bf16.msra.mxu0 0
  %85 = vmatprep.subr.bf16.mxu0 0
  %86 = vmatpush1.bf16.msra.mxu0 0
  %87 = vmatprep.subr.bf16.mxu0 0
  %88 = vmatpush1.bf16.msra.mxu0 0
  %89 = vmatprep.mubr.bf16.mxu0 0
  %90 = vmatmul.mubr.bf16.gmra.mrb[0].mxu0 %v49
  %v91 = vpop.f32.mrb[0].mxu0
  %v92 = vadd.f32 0.0, %v91
  %v93 = vpop.f32.mrb[0].mxu0
  %v94 = vpop.f32.mrb[0].mxu0
  %v95 = vadd.f32 0.0, %v94
  %v96 = vpop.f32.mrb[0].mxu0
  %97 = vdwg.mxu0
  %v98 = vtanh.pop %v92
  %v99 = vtanh.pop %v95
  %v100 = vadd.f32 %v98, 0.0
  %v101 = vadd.f32 %v99, 0.0
  %s102 = scalar_lea.vmem %s0, 8
  %v103 = vld [vmem:[%s102] sm:$0xf]
  %v104 = vld [vmem:[%s102 + $0x4] sm:$0xf]
  %v107 = vunpack.c.l.b16 %v103
  %v108 = vunpack.c.l.b16 %v104
  %v109 = vpack.c.b16 %v108, %v107
  %v111 = vsel %vm47, %v109, 0
  %113 = vmatprep.subr.bf16.mxu0 0
  %114 = vmatpush1.bf16.msra.mxu0 %v40
  %115 = vmatprep.subr.bf16.mxu0 0
  %116 = vmatpush1.bf16.msra.mxu0 %v41
  %117 = vmatprep.subr.bf16.mxu0 0
  %118 = vmatpush1.bf16.msra.mxu0 %v42
  %119 = vmatprep.subr.bf16.mxu0 0
  %120 = vmatpush1.bf16.msra.mxu0 %v55
  %121 = vmatprep.subr.bf16.mxu0 0
  %122 = vmatpush1.bf16.msra.mxu0 0
  %123 = vmatprep.subr.bf16.mxu0 0
  %124 = vmatpush1.bf16.msra.mxu0 0
  %125 = vmatprep.subr.bf16.mxu0 0
  %126 = vmatpush1.bf16.msra.mxu0 0
  %127 = vmatprep.subr.bf16.mxu0 0
  %128 = vmatpush1.bf16.msra.mxu0 0
  %129 = vmatprep.subr.bf16.mxu0 0
  %130 = vmatpush1.bf16.msra.mxu0 0
  %131 = vmatprep.subr.bf16.mxu0 0
  %132 = vmatpush1.bf16.msra.mxu0 0
  %133 = vmatprep.subr.bf16.mxu0 0
  %134 = vmatpush1.bf16.msra.mxu0 0
  %135 = vmatprep.subr.bf16.mxu0 0
  %136 = vmatpush1.bf16.msra.mxu0 0
  %137 = vmatprep.subr.bf16.mxu0 0
  %138 = vmatpush1.bf16.msra.mxu0 0
  %139 = vmatprep.subr.bf16.mxu0 0
  %140 = vmatpush1.bf16.msra.mxu0 0
  %141 = vmatprep.subr.bf16.mxu0 0
  %142 = vmatpush1.bf16.msra.mxu0 0
  %143 = vmatprep.subr.bf16.mxu0 0
  %144 = vmatpush1.bf16.msra.mxu0 0
  %145 = vmatprep.mubr.bf16.mxu0 0
  %146 = vmatmul.mubr.bf16.gmra.mrb[0].mxu0 %v111
  %v147 = vpop.f32.mrb[0].mxu0
  %v148 = vadd.f32 0.0, %v147
  %v149 = vpop.f32.mrb[0].mxu0
  %v150 = vpop.f32.mrb[0].mxu0
  %v151 = vadd.f32 0.0, %v150
  %v152 = vpop.f32.mrb[0].mxu0
  %153 = vdwg.mxu0
  %v154 = vtanh.pop %v148
  %v155 = vtanh.pop %v151
  %v156 = vadd.f32 %v100, %v154
  %v157 = vadd.f32 %v101, %v155
  %s158 = scalar_lea.vmem %s0, 16
  %v159 = vld [vmem:[%s158] sm:$0xf]
  %v160 = vld [vmem:[%s158 + $0x4] sm:$0xf]
  %v163 = vunpack.c.l.b16 %v159
  %v164 = vunpack.c.l.b16 %v160
  %v165 = vpack.c.b16 %v164, %v163
  %v167 = vsel %vm47, %v165, 0
  %169 = vmatprep.subr.bf16.mxu0 0
  %170 = vmatpush1.bf16.msra.mxu0 %v40
  %171 = vmatprep.subr.bf16.mxu0 0
  %172 = vmatpush1.bf16.msra.mxu0 %v41
  %173 = vmatprep.subr.bf16.mxu0 0
  %174 = vmatpush1.bf16.msra.mxu0 %v42
  %175 = vmatprep.subr.bf16.mxu0 0
  %176 = vmatpush1.bf16.msra.mxu0 %v55
  %177 = vmatprep.subr.bf16.mxu0 0
  %178 = vmatpush1.bf16.msra.mxu0 0
  %179 = vmatprep.subr.bf16.mxu0 0
  %180 = vmatpush1.bf16.msra.mxu0 0
  %181 = vmatprep.subr.bf16.mxu0 0
  %182 = vmatpush1.bf16.msra.mxu0 0
  %183 = vmatprep.subr.bf16.mxu0 0
  %184 = vmatpush1.bf16.msra.mxu0 0
  %185 = vmatprep.subr.bf16.mxu0 0
  %186 = vmatpush1.bf16.msra.mxu0 0
  %187 = vmatprep.subr.bf16.mxu0 0
  %188 = vmatpush1.bf16.msra.mxu0 0
  %189 = vmatprep.subr.bf16.mxu0 0
  %190 = vmatpush1.bf16.msra.mxu0 0
  %191 = vmatprep.subr.bf16.mxu0 0
  %192 = vmatpush1.bf16.msra.mxu0 0
  %193 = vmatprep.subr.bf16.mxu0 0
  %194 = vmatpush1.bf16.msra.mxu0 0
  %195 = vmatprep.subr.bf16.mxu0 0
  %196 = vmatpush1.bf16.msra.mxu0 0
  %197 = vmatprep.subr.bf16.mxu0 0
  %198 = vmatpush1.bf16.msra.mxu0 0
  %199 = vmatprep.subr.bf16.mxu0 0
  %200 = vmatpush1.bf16.msra.mxu0 0
  %201 = vmatprep.mubr.bf16.mxu0 0
  %202 = vmatmul.mubr.bf16.gmra.mrb[0].mxu0 %v167
  %v203 = vpop.f32.mrb[0].mxu0
  %v204 = vadd.f32 0.0, %v203
  %v205 = vpop.f32.mrb[0].mxu0
  %v206 = vpop.f32.mrb[0].mxu0
  %v207 = vadd.f32 0.0, %v206
  %v208 = vpop.f32.mrb[0].mxu0
  %209 = vdwg.mxu0
  %v210 = vtanh.pop %v204
  %v211 = vtanh.pop %v207
  %v212 = vadd.f32 %v156, %v210
  %v213 = vadd.f32 %v157, %v211
  %s214 = scalar_lea.vmem %s0, 24
  %v215 = vld [vmem:[%s214] sm:$0xf]
  %v216 = vld [vmem:[%s214 + $0x4] sm:$0xf]
  %v219 = vunpack.c.l.b16 %v215
  %v220 = vunpack.c.l.b16 %v216
  %v221 = vpack.c.b16 %v220, %v219
  %v223 = vsel %vm47, %v221, 0
  %225 = vmatprep.subr.bf16.mxu0 0
  %226 = vmatpush1.bf16.msra.mxu0 %v40
  %227 = vmatprep.subr.bf16.mxu0 0
  %228 = vmatpush1.bf16.msra.mxu0 %v41
  %229 = vmatprep.subr.bf16.mxu0 0
  %230 = vmatpush1.bf16.msra.mxu0 %v42
  %231 = vmatprep.subr.bf16.mxu0 0
  %232 = vmatpush1.bf16.msra.mxu0 %v55
  %233 = vmatprep.subr.bf16.mxu0 0
  %234 = vmatpush1.bf16.msra.mxu0 0
  %235 = vmatprep.subr.bf16.mxu0 0
  %236 = vmatpush1.bf16.msra.mxu0 0
  %237 = vmatprep.subr.bf16.mxu0 0
  %238 = vmatpush1.bf16.msra.mxu0 0
  %239 = vmatprep.subr.bf16.mxu0 0
  %240 = vmatpush1.bf16.msra.mxu0 0
  %241 = vmatprep.subr.bf16.mxu0 0
  %242 = vmatpush1.bf16.msra.mxu0 0
  %243 = vmatprep.subr.bf16.mxu0 0
  %244 = vmatpush1.bf16.msra.mxu0 0
  %245 = vmatprep.subr.bf16.mxu0 0
  %246 = vmatpush1.bf16.msra.mxu0 0
  %247 = vmatprep.subr.bf16.mxu0 0
  %248 = vmatpush1.bf16.msra.mxu0 0
  %249 = vmatprep.subr.bf16.mxu0 0
  %250 = vmatpush1.bf16.msra.mxu0 0
  %251 = vmatprep.subr.bf16.mxu0 0
  %252 = vmatpush1.bf16.msra.mxu0 0
  %253 = vmatprep.subr.bf16.mxu0 0
  %254 = vmatpush1.bf16.msra.mxu0 0
  %255 = vmatprep.subr.bf16.mxu0 0
  %256 = vmatpush1.bf16.msra.mxu0 0
  %257 = vmatprep.mubr.bf16.mxu0 0
  %258 = vmatmul.mubr.bf16.gmra.mrb[0].mxu0 %v223
  %v259 = vpop.f32.mrb[0].mxu0
  %v260 = vadd.f32 0.0, %v259
  %v261 = vpop.f32.mrb[0].mxu0
  %v262 = vpop.f32.mrb[0].mxu0
  %v263 = vadd.f32 0.0, %v262
  %v264 = vpop.f32.mrb[0].mxu0
  %265 = vdwg.mxu0
  %v266 = vtanh.pop %v260
  %v267 = vtanh.pop %v263
  %v268 = vadd.f32 %v212, %v266
  %v269 = vadd.f32 %v213, %v267
  %v270 = vmul.f32 %v268, 0.25
  %v271 = vmul.f32 %v269, 0.25
  %v272 = vsub.f32 %v270, 0.2
  %v273 = vsub.f32 %v271, 0.2
  %274 = vst [vmem:[%s2] sm:$0xff] %v272
  %275 = vst [vmem:[%s2 + $0x8] sm:$0xff] %v273
  // Predicated region
  $region10: #{model_forward.1} parent=0 // pred_check
    _
  $region11: #{model_forward.1} parent=0 // pred_check_branch
    %277 = sbr.rel (0) target = $region13
  $region12: #{model_forward.1} parent=0 // pred_region
    _
  $region13: #{model_forward.1} parent=0 // pred_fallthru
    _
  // Predicated region
  $region14: #{model_forward.1} parent=0 // pred_check
    _
  $region15: #{model_forward.1} parent=0 // pred_check_branch
    %279 = sbr.rel (0) target = $region17
  $region16: #{model_forward.1} parent=0 // pred_region
    _
  $region17: #{model_forward.1} parent=0 // pred_fallthru
    _

</llo_original>
